<compile_context>
chip_gen: v7x
topology: tpu7x:2x2x1
jax: 0.10.0
libtpu: 0.0.40
codegen_flags: <defaults>
</compile_context>

<pallas_src>
import jax
import jax.numpy as jnp
from jax import lax
from jax.experimental import pallas as pl
from jax.experimental.pallas import tpu as pltpu


_LANE_BLOCK = 256  # output-column block (multiple of 128 -> unmasked stores)


# ---------------------------------------------------------------------------
# Fused kernel: weight generation (low-rank + base) and conv-as-matmul
# ---------------------------------------------------------------------------
def _rg_conv_fused_kernel(bt_ref, at_ref, bw_ref, patch_ref, o_ref):
    # Weight generation is recomputed per grid step: it is a tiny
    # (c_out, K*kw) x (K*kw, 36) dot, and recomputing avoids a pl.when-guarded
    # scratch that would be unsafe when "parallel" steps are split across
    # TensorCores (v7x megacore).
    w2d = bw_ref[...] + jnp.dot(
        bt_ref[...], at_ref[...], preferred_element_type=jnp.float32)
    o_ref[...] = jnp.dot(
        w2d, patch_ref[...], preferred_element_type=jnp.float32
    ).astype(o_ref.dtype)


def _conv_only_kernel(bw_ref, patch_ref, o_ref):
    o_ref[...] = jnp.dot(
        bw_ref[...], patch_ref[...], preferred_element_type=jnp.float32
    ).astype(o_ref.dtype)


# ---------------------------------------------------------------------------
# im2col (wrapper-side layout plumbing): contraction order q = (a, b, ci),
# output-position order p = (n, oh, ow)
# ---------------------------------------------------------------------------
def _im2col(x, kh, kw, stride, padding, dilation):
    n, c_in = x.shape[0], x.shape[1]
    if padding:
        x = jnp.pad(x, ((0, 0), (0, 0), (padding, padding), (padding, padding)))
    hp, wp = x.shape[2], x.shape[3]
    oh = (hp - dilation * (kh - 1) - 1) // stride + 1
    ow = (wp - dilation * (kw - 1) - 1) // stride + 1
    taps = []
    for a in range(kh):
        for b in range(kw):
            h0 = a * dilation
            w0 = b * dilation
            taps.append(
                x[:, :,
                  h0:h0 + (oh - 1) * stride + 1:stride,
                  w0:w0 + (ow - 1) * stride + 1:stride])      # (n, c_in, oh, ow)
    patches = jnp.stack(taps, axis=0)                          # (kh*kw, n, c_in, oh, ow)
    patches = patches.transpose(0, 2, 1, 3, 4)                 # (kh*kw, c_in, n, oh, ow)
    patches = patches.reshape(kh * kw * c_in, n * oh * ow)     # (Q, P)
    return patches, oh, ow


# ---------------------------------------------------------------------------
# RG_Conv forward
# ---------------------------------------------------------------------------
def rg_conv_forward(params, x, task, *, rg=True, stride=1, padding=0,
                    dilation=1, groups=1):
    # TODO(synk): groups > 1 has no clean single-matmul form here; the module
    # default (and only tested mode) is groups == 1.
    assert groups == 1
    base_w = params["weight"]                     # (c_out, c_in, kh, kw)
    c_out, c_in, kh, kw = base_w.shape
    n = x.shape[0]
    assert x.shape[1] == c_in

    patches, oh, ow = _im2col(x, kh, kw, stride, padding, dilation)
    q_dim = c_in * kh * kw
    p_dim = n * oh * ow

    # Pad output columns to a multiple of the lane block (unmasked stores).
    tp = _LANE_BLOCK
    p_pad = ((p_dim + tp - 1) // tp) * tp
    if p_pad != p_dim:
        patches = jnp.pad(patches, ((0, 0), (0, p_pad - p_dim)))

    # Base weight as a 2-D single-tile operand, contraction order
    # q = (a*kw + b)*c_in + ci  (spatial-major, channel-minor).
    base2d = base_w.transpose(0, 2, 3, 1).reshape(c_out, q_dim)

    grid = (p_pad // tp,)
    patch_spec = pl.BlockSpec((q_dim, tp), lambda p: (0, p))
    out_spec = pl.BlockSpec((c_out, tp), lambda p: (0, p))
    cparams = pltpu.CompilerParams(dimension_semantics=("parallel",))

    if rg:
        lm = params["LM_list"][task]              # (kh*c_in, K)
        rm = params["RM_list"][task]              # (K, kw*c_out)
        K = lm.shape[1]
        # bt @ at == flatten of (LM@RM).view(kh,kw,c_in,c_out).permute(3,2,0,1)
        # to (c_out, q_dim).  Parameter-sized index plumbing only.
        eye = jnp.eye(kw, dtype=lm.dtype)
        at = (lm.T[:, None, :, None] * eye[None, :, None, :]).reshape(K * kw, q_dim)
        bt = rm.reshape(K * kw, c_out).T          # (c_out, K*kw)

        out2d = pl.pallas_call(
            _rg_conv_fused_kernel,
            out_shape=jax.ShapeDtypeStruct((c_out, p_pad), x.dtype),
            grid_spec=pltpu.PrefetchScalarGridSpec(
                num_scalar_prefetch=0,
                grid=grid,
                in_specs=[
                    pl.BlockSpec((c_out, K * kw), lambda p: (0, 0)),
                    pl.BlockSpec((K * kw, q_dim), lambda p: (0, 0)),
                    pl.BlockSpec((c_out, q_dim), lambda p: (0, 0)),
                    patch_spec,
                ],
                out_specs=out_spec),
            compiler_params=cparams,
        )(bt, at, base2d, patches)
    else:
        out2d = pl.pallas_call(
            _conv_only_kernel,
            out_shape=jax.ShapeDtypeStruct((c_out, p_pad), x.dtype),
            grid_spec=pltpu.PrefetchScalarGridSpec(
                num_scalar_prefetch=0,
                grid=grid,
                in_specs=[pl.BlockSpec((c_out, q_dim), lambda p: (0, 0)),
                          patch_spec],
                out_specs=out_spec),
            compiler_params=cparams,
        )(base2d, patches)

    # Lane-dense kernel output -> NCHW (wrapper-side layout plumbing).
    out = out2d[:, :p_dim].reshape(c_out, n, oh, ow).transpose(1, 0, 2, 3)
    return out


# ---------------------------------------------------------------------------
# Deterministic parameter init (kaiming-uniform-style bounds)
# ---------------------------------------------------------------------------
def _kaiming_uniform(key, shape, fan_in):
    bound = (6.0 / fan_in) ** 0.5
    return jax.random.uniform(key, shape, jnp.float32, -bound, bound)


def make_params(key, task_num, K, c_in, c_out, kernel_size, scale=0.1):
    kh = kw = kernel_size
    keys = jax.random.split(key, 1 + 2 * task_num)
    weight = _kaiming_uniform(keys[0], (c_out, c_in, kh, kw),
                              fan_in=c_in * kh * kw)
    lm_list = [scale * _kaiming_uniform(keys[1 + t], (kh * c_in, K), fan_in=K)
               for t in range(task_num)]
    rm_list = [scale * _kaiming_uniform(keys[1 + task_num + t],
                                        (K, kw * c_out), fan_in=kw * c_out)
               for t in range(task_num)]
    return {"weight": weight, "LM_list": lm_list, "RM_list": rm_list}


# ---------------------------------------------------------------------------
# Pure-JAX reference (same math / layout as the PyTorch module)
# ---------------------------------------------------------------------------
def _reference(params, x, task, rg, stride, padding, dilation):
    base_w = params["weight"]
    c_out, c_in, kh, kw = base_w.shape
    if rg:
        r = (params["LM_list"][task] @ params["RM_list"][task]).reshape(
            kh, kw, c_in, c_out).transpose(3, 2, 0, 1)
        w = r + base_w
    else:
        w = base_w
    return lax.conv_general_dilated(
        x, w, window_strides=(stride, stride),
        padding=((padding, padding), (padding, padding)),
        rhs_dilation=(dilation, dilation),
        dimension_numbers=("NCHW", "OIHW", "NCHW"))


if __name__ == "__main__":
    # Small shapes consistent with the module: K=8, task_num=2, c_in=4,
    # c_out=8, kernel_size=3.
    batch, c_in, c_out, ksize, K, task_num = 2, 4, 8, 3, 8, 2
    H = W = 16

    key = jax.random.PRNGKey(0)
    k_par, k_x = jax.random.split(key)
    params = make_params(k_par, task_num, K, c_in, c_out, ksize)
    x = jax.random.normal(k_x, (batch, c_in, H, W), jnp.float32)

    configs = [
        dict(task=0, rg=True, stride=1, padding=0, dilation=1),
        dict(task=1, rg=True, stride=2, padding=1, dilation=1),
        dict(task=0, rg=False, stride=1, padding=0, dilation=1),
    ]
    for cfg in configs:
        fwd = jax.jit(lambda p, xx, c=cfg: rg_conv_forward(
            p, xx, c["task"], rg=c["rg"], stride=c["stride"],
            padding=c["padding"], dilation=c["dilation"]))
        out = jax.block_until_ready(fwd(params, x))
        ref = _reference(params, x, cfg["task"], cfg["rg"], cfg["stride"],
                         cfg["padding"], cfg["dilation"])
        assert out.shape == ref.shape, (out.shape, ref.shape)
        max_err = float(jnp.max(jnp.abs(out - ref)))
        assert jnp.allclose(out, ref, atol=1e-3, rtol=1e-3), (cfg, max_err)

    print("KERNEL_OK")
</pallas_src>

<mosaic_0001>
module attributes {stable_mosaic.version = 11 : i64} {
  func.func @_rg_conv_fused_kernel(%arg0: i32, %arg1: memref<8x24xf32, #tpu.memory_space<vmem>>, %arg2: memref<24x36xf32, #tpu.memory_space<vmem>>, %arg3: memref<8x36xf32, #tpu.memory_space<vmem>>, %arg4: memref<36x256xf32, #tpu.memory_space<vmem>>, %arg5: memref<8x256xf32, #tpu.memory_space<vmem>>) attributes {dimension_semantics = [#tpu.dimension_semantics<parallel>], iteration_bounds = array<i64: 2>, scalar_prefetch = 0 : i64, scratch_operands = 0 : i64, tpu.core_type = #tpu.core_type<tc>, window_params = [{pipeline_mode = #tpu.pipeline_mode<synchronous>, transform_indices = @transform_0, window_bounds = array<i64: 8, 24>}, {pipeline_mode = #tpu.pipeline_mode<synchronous>, transform_indices = @transform_1, window_bounds = array<i64: 24, 36>}, {pipeline_mode = #tpu.pipeline_mode<synchronous>, transform_indices = @transform_2, window_bounds = array<i64: 8, 36>}, {transform_indices = @transform_3, window_bounds = array<i64: 36, 256>}, {transform_indices = @transform_4, window_bounds = array<i64: 8, 256>}]} {
    %c0 = arith.constant 0 : index
    %c0_0 = arith.constant 0 : index
    %0 = vector.load %arg3[%c0, %c0_0] : memref<8x36xf32, #tpu.memory_space<vmem>>, vector<8x36xf32>
    %c0_1 = arith.constant 0 : index
    %c0_2 = arith.constant 0 : index
    %1 = vector.load %arg1[%c0_1, %c0_2] : memref<8x24xf32, #tpu.memory_space<vmem>>, vector<8x24xf32>
    %c0_3 = arith.constant 0 : index
    %c0_4 = arith.constant 0 : index
    %2 = vector.load %arg2[%c0_3, %c0_4] : memref<24x36xf32, #tpu.memory_space<vmem>>, vector<24x36xf32>
    %cst = arith.constant dense<0.000000e+00> : vector<8x36xf32>
    %3 = tpu.matmul %1, %2, %cst {dimension_numbers = #tpu.dot_dimension_numbers<[1], [0], [0], [1], [0, 0, 1, 1], [], []>} : vector<8x24xf32>, vector<24x36xf32>, vector<8x36xf32> -> vector<8x36xf32>
    %4 = arith.addf %0, %3 : vector<8x36xf32>
    %c0_5 = arith.constant 0 : index
    %c0_6 = arith.constant 0 : index
    %5 = vector.load %arg4[%c0_5, %c0_6] : memref<36x256xf32, #tpu.memory_space<vmem>>, vector<36x256xf32>
    %cst_7 = arith.constant dense<0.000000e+00> : vector<8x256xf32>
    %6 = tpu.matmul %4, %5, %cst_7 {dimension_numbers = #tpu.dot_dimension_numbers<[1], [0], [0], [1], [0, 0, 1, 1], [], []>} : vector<8x36xf32>, vector<36x256xf32>, vector<8x256xf32> -> vector<8x256xf32>
    %c0_8 = arith.constant 0 : index
    %c0_9 = arith.constant 0 : index
    %7 = vector.load %arg5[%c0_8, %c0_9] : memref<8x256xf32, #tpu.memory_space<vmem>>, vector<8x256xf32>
    tpu.vector_store %arg5[%c0_8, %c0_9], %6 {strides = array<i32>} : memref<8x256xf32, #tpu.memory_space<vmem>>, vector<8x256xf32>,
    return
  }
  func.func @transform_0(%arg0: i32) -> (i32, i32) {
    %c0_i32 = arith.constant 0 : i32
    %c0_i32_0 = arith.constant 0 : i32
    %c0_i32_1 = arith.constant 0 : i32
    return %c0_i32, %c0_i32_0 : i32, i32
  }
  func.func @transform_1(%arg0: i32) -> (i32, i32) {
    %c0_i32 = arith.constant 0 : i32
    %c0_i32_0 = arith.constant 0 : i32
    %c0_i32_1 = arith.constant 0 : i32
    return %c0_i32, %c0_i32_0 : i32, i32
  }
  func.func @transform_2(%arg0: i32) -> (i32, i32) {
    %c0_i32 = arith.constant 0 : i32
    %c0_i32_0 = arith.constant 0 : i32
    %c0_i32_1 = arith.constant 0 : i32
    return %c0_i32, %c0_i32_0 : i32, i32
  }
  func.func @transform_3(%arg0: i32) -> (i32, i32) {
    %c0_i32 = arith.constant 0 : i32
    %c0_i32_0 = arith.constant 0 : i32
    return %c0_i32, %arg0 : i32, i32
  }
  func.func @transform_4(%arg0: i32) -> (i32, i32) {
    %c0_i32 = arith.constant 0 : i32
    %c0_i32_0 = arith.constant 0 : i32
    return %c0_i32, %arg0 : i32, i32
  }
}

</mosaic_0001>

<llo_original>
// kernel: _lambda_.1
$region0: #{_lambda_.1}
  #allocation0 [shape = 'u32[]', space=smem, size = 0x4, offset = 0x4, fixed_abs, tag = 'smem constant byte address 0x4 - core index']
  #allocation1 [shape = 'u32[144,128]{1,0:T(1,128)}', space=vmem, size = 0x12000, scoped, tag = 'internal scratch']
  %s0 = inlined_call_operand.vmem [shape: f32[8,24], index: 0, kind: input, shape index: {}]
  %s1 = inlined_call_operand.vmem [shape: f32[24,36], index: 1, kind: input, shape index: {}]
  %s2 = inlined_call_operand.vmem [shape: f32[8,36], index: 2, kind: input, shape index: {}]
  %s3 = inlined_call_operand.vmem [shape: f32[36,512], index: 3, kind: input, shape index: {}]
  %s4 = inlined_call_operand.vmem [shape: f32[8,512], index: 4, kind: output, shape index: {}]
  %s5 = sld [smem:[#allocation0]]
  $region72: #{_lambda_.1} parent=0
    _
  %s7 = ssub.s32 1, %s5
  %s8 = scalar_select 0, %s7, %s5
  $region1: #{_lambda_.1} parent=0
    #allocation2 [shape = 'u8[81920]{0}', space=vmem, size = 0x14000, scoped, tag = 'input window, operand 3']
    loop: start=0, step=1, limit=4
    $region2: #{_lambda_.1} parent=1 // loop_pre_header
      _
    $region3: #{_lambda_.1} parent=1 // loop_header
      %s10 = sphi 0, %s14
      %p11 = scmp.ge.s32.totalorder %s10, 4
      %s18 = sphi 0, %s18
      %s20 = sphi 0, %s18
      %s21 = sphi 0, %s20
      %s35 = sphi 0, %s21
      %s39 = sphi 0, %s39
      %s41 = sphi 0, %s39
      %s42 = sphi 0, %s41
      %s56 = sphi 0, %s42
      %s60 = sphi 0, %s60
      %s62 = sphi 0, %s60
      %s63 = sphi 0, %s62
      %s77 = sphi 0, %s63
      %s83 = sphi 0, %s85
      %s86 = sphi 0, %s83
      %s87 = sphi 0, %s86
      %s103 = sphi 0, %s87
      %s109 = sphi 0, %s111
      %s112 = sphi 0, %s109
      %s113 = sphi 0, %s112
      %s129 = sphi 0, %s113
    $region4: #{_lambda_.1} parent=1 // loop_header_branch
      %13 = sbr.rel (%p11) target = $region8
    $region5: #{_lambda_.1} parent=1 // loop_body
      %s15 = ssub.s32 %s10, 1
      %s16 = ssub.s32 %s10, 2
      %s17 = sadd.s32 %s10, 1
      %s19 = sadd.s32 %s18, 1
      %p22 = scmp.eq.s32.totalorder %s10, 1
      %p23 = scmp.ne.s32.totalorder %s18, %s20
      %p24 = scmp.eq.s32.totalorder %s10, 0
      %p25 = por %p23, %p24
      %p26 = scmp.ne.s32.totalorder %s18, %s20
      %p27 = scmp.eq.s32.totalorder %s15, 1
      %p28 = por %p26, %p27
      %p29 = scmp.ne.s32.totalorder %s20, %s21
      %p30 = scmp.eq.s32.totalorder %s15, 0
      %p31 = por %p29, %p30
      %p32 = scmp.ne.s32.totalorder %s20, %s21
      %p33 = scmp.eq.s32.totalorder %s16, 1
      %p34 = por %p32, %p33
      %p36 = scmp.ne.s32.totalorder %s21, %s35
      %p37 = scmp.eq.s32.totalorder %s16, 0
      %p38 = por %p36, %p37
      %s40 = sadd.s32 %s39, 1
      %p43 = scmp.eq.s32.totalorder %s10, 1
      %p44 = scmp.ne.s32.totalorder %s39, %s41
      %p45 = scmp.eq.s32.totalorder %s10, 0
      %p46 = por %p44, %p45
      %p47 = scmp.ne.s32.totalorder %s39, %s41
      %p48 = scmp.eq.s32.totalorder %s15, 1
      %p49 = por %p47, %p48
      %p50 = scmp.ne.s32.totalorder %s41, %s42
      %p51 = scmp.eq.s32.totalorder %s15, 0
      %p52 = por %p50, %p51
      %p53 = scmp.ne.s32.totalorder %s41, %s42
      %p54 = scmp.eq.s32.totalorder %s16, 1
      %p55 = por %p53, %p54
      %p57 = scmp.ne.s32.totalorder %s42, %s56
      %p58 = scmp.eq.s32.totalorder %s16, 0
      %p59 = por %p57, %p58
      %s61 = sadd.s32 %s60, 1
      %p64 = scmp.eq.s32.totalorder %s10, 1
      %p65 = scmp.ne.s32.totalorder %s60, %s62
      %p66 = scmp.eq.s32.totalorder %s10, 0
      %p67 = por %p65, %p66
      %p68 = scmp.ne.s32.totalorder %s60, %s62
      %p69 = scmp.eq.s32.totalorder %s15, 1
      %p70 = por %p68, %p69
      %p71 = scmp.ne.s32.totalorder %s62, %s63
      %p72 = scmp.eq.s32.totalorder %s15, 0
      %p73 = por %p71, %p72
      %p74 = scmp.ne.s32.totalorder %s62, %s63
      %p75 = scmp.eq.s32.totalorder %s16, 1
      %p76 = por %p74, %p75
      %p78 = scmp.ne.s32.totalorder %s63, %s77
      %p79 = scmp.eq.s32.totalorder %s16, 0
      %p80 = por %p78, %p79
      %s81 = ssub.s32 %s10, %s17
      %p82 = scmp.eq.s32.totalorder %s81, 0
      %s84 = sadd.s32 %s83, 1
      %s85 = scalar_select %p82, %s83, %s84
      %p88 = pneg %p82
      %p89 = scmp.eq.s32.totalorder %s10, 1
      %p90 = por %p88, %p89
      %p91 = scmp.ne.s32.totalorder %s83, %s86
      %p92 = scmp.eq.s32.totalorder %s10, 0
      %p93 = por %p91, %p92
      %p94 = scmp.ne.s32.totalorder %s83, %s86
      %p95 = scmp.eq.s32.totalorder %s15, 1
      %p96 = por %p94, %p95
      %p97 = scmp.ne.s32.totalorder %s86, %s87
      %p98 = scmp.eq.s32.totalorder %s15, 0
      %p99 = por %p97, %p98
      %p100 = scmp.ne.s32.totalorder %s86, %s87
      %p101 = scmp.eq.s32.totalorder %s16, 1
      %p102 = por %p100, %p101
      %p104 = scmp.ne.s32.totalorder %s87, %s103
      %p105 = scmp.eq.s32.totalorder %s16, 0
      %p106 = por %p104, %p105
      %s107 = ssub.s32 %s10, %s17
      %p108 = scmp.eq.s32.totalorder %s107, 0
      %s110 = sadd.s32 %s109, 1
      %s111 = scalar_select %p108, %s109, %s110
      %p114 = pneg %p108
      %p115 = scmp.eq.s32.totalorder %s10, 1
      %p116 = por %p114, %p115
      %p117 = scmp.ne.s32.totalorder %s109, %s112
      %p118 = scmp.eq.s32.totalorder %s10, 0
      %p119 = por %p117, %p118
      %p120 = scmp.ne.s32.totalorder %s109, %s112
      %p121 = scmp.eq.s32.totalorder %s15, 1
      %p122 = por %p120, %p121
      %p123 = scmp.ne.s32.totalorder %s112, %s113
      %p124 = scmp.eq.s32.totalorder %s15, 0
      %p125 = por %p123, %p124
      %p126 = scmp.ne.s32.totalorder %s112, %s113
      %p127 = scmp.eq.s32.totalorder %s16, 1
      %p128 = por %p126, %p127
      %p130 = scmp.ne.s32.totalorder %s113, %s129
      %p131 = scmp.eq.s32.totalorder %s16, 0
      %p132 = por %p130, %p131
      %p133 = scmp.le.s32.totalorder 1, %s10
      %p134 = scmp.lt.s32.totalorder %s10, 3
      %p135 = pnand %p133, %p134
      %p136 = pneg %p135
      // Predicated region
      $region9: #{_lambda_.1} parent=5 // pred_check
        _
      $region10: #{_lambda_.1} parent=5 // pred_check_branch
        %138 = sbr.rel (%p135) target = $region12
      $region11: #{_lambda_.1} parent=5 // pred_region
        %s139 = ssub.s32 %s10, 1
        // Predicated region
        $region13: #{_lambda_.1} parent=11 // pred_check
          %p140 = pneg %p31
        $region14: #{_lambda_.1} parent=11 // pred_check_branch
          %142 = sbr.rel (%p140) target = $region16
        $region15: #{_lambda_.1} parent=11 // pred_region
          _
        $region16: #{_lambda_.1} parent=11 // pred_fallthru
          _
        // Predicated region
        $region17: #{_lambda_.1} parent=11 // pred_check
          %p143 = pneg %p52
        $region18: #{_lambda_.1} parent=11 // pred_check_branch
          %145 = sbr.rel (%p143) target = $region20
        $region19: #{_lambda_.1} parent=11 // pred_region
          _
        $region20: #{_lambda_.1} parent=11 // pred_fallthru
          _
        // Predicated region
        $region21: #{_lambda_.1} parent=11 // pred_check
          %p146 = pneg %p73
        $region22: #{_lambda_.1} parent=11 // pred_check_branch
          %148 = sbr.rel (%p146) target = $region24
        $region23: #{_lambda_.1} parent=11 // pred_region
          _
        $region24: #{_lambda_.1} parent=11 // pred_fallthru
          _
      $region12: #{_lambda_.1} parent=5 // pred_fallthru
        _
      %p149 = scmp.lt.s32.totalorder %s10, 2
      // Predicated region
      $region25: #{_lambda_.1} parent=5 // pred_check
        %p150 = pneg %p149
      $region26: #{_lambda_.1} parent=5 // pred_check_branch
        %152 = sbr.rel (%p150) target = $region28
      $region27: #{_lambda_.1} parent=5 // pred_region
        // Predicated region
        $region29: #{_lambda_.1} parent=27 // pred_check
          %p153 = pneg %p93
        $region30: #{_lambda_.1} parent=27 // pred_check_branch
          %155 = sbr.rel (%p153) target = $region32
        $region31: #{_lambda_.1} parent=27 // pred_region
          %s156 = sand.u32 %s83, 1
          %s157 = sand.u32 %s83, 1
          %s158 = smul.addr %s157, 80
          %s159 = scalar_lea.vmem [#allocation2], %s158
          %s160 = smul.u32 2, %s10
          %s161 = smul.addr %s160, 8
          %s162 = scalar_lea.vmem %s3, %s161
          // Predicated region
          $region33: #{_lambda_.1} parent=31 // pred_check
            _
          $region34: #{_lambda_.1} parent=31 // pred_check_branch
            %164 = sbr.rel (0) target = $region36
          $region35: #{_lambda_.1} parent=31 // pred_region
            // Predicated region
            $region37: #{_lambda_.1} parent=35 // pred_check
              _
            $region38: #{_lambda_.1} parent=35 // pred_check_branch
              %166 = sbr.rel (0) target = $region40
            $region39: #{_lambda_.1} parent=35 // pred_region
              loop: start=0, step=1, limit=1
              $region41: #{_lambda_.1} parent=39 // loop_pre_header
                _
              $region42: #{_lambda_.1} parent=39 // loop_header
                %s168 = sphi 0, %s172
                %p169 = scmp.ge.s32.totalorder %s168, 1
                %s173 = sphi %s162, %s162
                %s174 = sphi %s159, %s159
              $region43: #{_lambda_.1} parent=39 // loop_header_branch
                %171 = sbr.rel (%p169) target = $region47
              $region44: #{_lambda_.1} parent=39 // loop_body
                %v175 = vld [vmem:[%s173] sm:$0xff]
                %176 = vst [vmem:[%s174] sm:$0xff] %v175
                %v177 = vld [vmem:[%s173 + $0x8] sm:$0xff]
                %178 = vst [vmem:[%s174 + $0x8] sm:$0xff] %v177
                %v179 = vld [vmem:[%s173 + $0x20] sm:$0xff]
                %180 = vst [vmem:[%s174 + $0x10] sm:$0xff] %v179
                %v181 = vld [vmem:[%s173 + $0x28] sm:$0xff]
                %182 = vst [vmem:[%s174 + $0x18] sm:$0xff] %v181
                %v183 = vld [vmem:[%s173 + $0x40] sm:$0xff]
                %184 = vst [vmem:[%s174 + $0x20] sm:$0xff] %v183
                %v185 = vld [vmem:[%s173 + $0x48] sm:$0xff]
                %186 = vst [vmem:[%s174 + $0x28] sm:$0xff] %v185
                %v187 = vld [vmem:[%s173 + $0x60] sm:$0xff]
                %188 = vst [vmem:[%s174 + $0x30] sm:$0xff] %v187
                %v189 = vld [vmem:[%s173 + $0x68] sm:$0xff]
                %190 = vst [vmem:[%s174 + $0x38] sm:$0xff] %v189
                %v191 = vld [vmem:[%s173 + $0x80] sm:$0xff]
                %192 = vst [vmem:[%s174 + $0x40] sm:$0xff] %v191
                %v193 = vld [vmem:[%s173 + $0x88] sm:$0xff]
                %194 = vst [vmem:[%s174 + $0x48] sm:$0xff] %v193
              $region45: #{_lambda_.1} parent=39 // loop_footer
                %s172 = sadd.s32 1, %s168
              $region46: #{_lambda_.1} parent=39 // loop_footer_branch
                %167 = sbr.rel target = $region42
              $region47: #{_lambda_.1} parent=39 // loop_exit
                _
            $region40: #{_lambda_.1} parent=35 // pred_fallthru
              _
            // Predicated region
            $region48: #{_lambda_.1} parent=35 // pred_check
              _
            $region49: #{_lambda_.1} parent=35 // pred_check_branch
              %196 = sbr.rel target = $region51
            $region50: #{_lambda_.1} parent=35 // pred_region
              _
            $region51: #{_lambda_.1} parent=35 // pred_fallthru
              _
          $region36: #{_lambda_.1} parent=31 // pred_fallthru
            _
          %197 = vnop
        $region32: #{_lambda_.1} parent=27 // pred_fallthru
          _
      $region28: #{_lambda_.1} parent=5 // pred_fallthru
        _
      %p198 = scmp.le.s32.totalorder 1, %s10
      %p199 = scmp.lt.s32.totalorder %s10, 3
      %p200 = pnand %p198, %p199
      %p201 = pneg %p200
      // Predicated region
      $region52: #{_lambda_.1} parent=5 // pred_check
        _
      $region53: #{_lambda_.1} parent=5 // pred_check_branch
        %203 = sbr.rel (%p200) target = $region55
      $region54: #{_lambda_.1} parent=5 // pred_region
        %s204 = ssub.s32 %s10, 1
        %s205 = sand.u32 %s86, 1
        %s206 = sand.u32 %s86, 1
        %s207 = smul.addr %s206, 80
        %s208 = scalar_lea.vmem [#allocation2], %s207
        // Predicated region
        $region56: #{_lambda_.1} parent=54 // pred_check
          %p209 = pneg %p99
        $region57: #{_lambda_.1} parent=54 // pred_check_branch
          %211 = sbr.rel (%p209) target = $region59
        $region58: #{_lambda_.1} parent=54 // pred_region
          _
        $region59: #{_lambda_.1} parent=54 // pred_fallthru
          _
        %p212 = pneg %p31
        %p213 = pneg %p28
        %p214 = pneg %p52
        %p215 = pneg %p49
        %p216 = pneg %p73
        %p217 = pneg %p70
        %s218 = sand.u32 %s86, 1
        %s219 = sand.u32 %s86, 1
        %s220 = smul.addr %s219, 80
        %s221 = scalar_lea.vmem [#allocation2], %s220
        %p222 = pneg %p99
        %p223 = pneg %p96
        %p224 = pneg %p125
        %p225 = pneg %p122
        %s226 = smul.u32 2, %s15
        %p227 = scmp.lt.s32.totalorder %s226, 3
        %s228 = scalar_select %p227, %s226, 3
        %s229 = smul.addr %s228, 8
        %s230 = scalar_lea.vmem %s4, %s229
        %s231 = smul.u32 2, %s15
        %s232 = smul.u32 2, %s15
        %p233 = scmp.lt.s32.totalorder %s232, 3
        %s234 = scalar_select %p233, %s232, 3
        %s235 = smul.addr %s234, 8
        %s236 = scalar_lea.vmem %s4, %s235
        %s237 = smul.u32 2, %s15
        %v238 = vld [vmem:[%s2] sm:$0xff]
        %v239 = vld [vmem:[%s0] sm:$0xff]
        %v240 = vld [vmem:[%s1] sm:$0xff]
        %v241 = vld [vmem:[%s1 + $0x8] sm:$0xff]
        %v242 = vld [vmem:[%s1 + $0x10] sm:$0xff]
        %vm243 = vcmask 195584
        %v245 = vsel %vm243, %v239, 0
        %247 = vmatprep.subr.mxu0 0.0
        %248 = vmatpush1.msra.mxu0 %v240
        %249 = vmatprep.subr.mxu0 0.0
        %250 = vmatpush1.msra.mxu0 %v241
        %251 = vmatprep.subr.mxu0 0.0
        %252 = vmatpush1.msra.mxu0 %v242
        %253 = vmatprep.subr.mxu0 0.0
        %254 = vmatpush1.msra.mxu0 0.0
        %255 = vmatprep.subr.mxu0 0.0
        %256 = vmatpush1.msra.mxu0 0.0
        %257 = vmatprep.subr.mxu0 0.0
        %258 = vmatpush1.msra.mxu0 0.0
        %259 = vmatprep.subr.mxu0 0.0
        %260 = vmatpush1.msra.mxu0 0.0
        %261 = vmatprep.subr.mxu0 0.0
        %262 = vmatpush1.msra.mxu0 0.0
        %263 = vmatprep.subr.mxu0 0.0
        %264 = vmatpush1.msra.mxu0 0.0
        %265 = vmatprep.subr.mxu0 0.0
        %266 = vmatpush1.msra.mxu0 0.0
        %267 = vmatprep.subr.mxu0 0.0
        %268 = vmatpush1.msra.mxu0 0.0
        %269 = vmatprep.subr.mxu0 0.0
        %270 = vmatpush1.msra.mxu0 0.0
        %271 = vmatprep.subr.mxu0 0.0
        %272 = vmatpush1.msra.mxu0 0.0
        %273 = vmatprep.subr.mxu0 0.0
        %274 = vmatpush1.msra.mxu0 0.0
        %275 = vmatprep.subr.mxu0 0.0
        %276 = vmatpush1.msra.mxu0 0.0
        %277 = vmatprep.subr.mxu0 0.0
        %278 = vmatpush1.msra.mxu0 0.0
        %279 = vmatprep.subr.mxu0 0.0
        %280 = vmatpush1.msra.mxu0 0.0
        %281 = vmatprep.subr.mxu0 0.0
        %282 = vmatpush1.msra.mxu0 0.0
        %283 = vmatprep.subr.mxu0 0.0
        %284 = vmatpush1.msra.mxu0 0.0
        %285 = vmatprep.subr.mxu0 0.0
        %286 = vmatpush1.msra.mxu0 0.0
        %287 = vmatprep.subr.mxu0 0.0
        %288 = vmatpush1.msra.mxu0 0.0
        %289 = vmatprep.subr.mxu0 0.0
        %290 = vmatpush1.msra.mxu0 0.0
        %291 = vmatprep.subr.mxu0 0.0
        %292 = vmatpush1.msra.mxu0 0.0
        %293 = vmatprep.subr.mxu0 0.0
        %294 = vmatpush1.msra.mxu0 0.0
        %295 = vmatprep.subr.mxu0 0.0
        %296 = vmatpush1.msra.mxu0 0.0
        %297 = vmatprep.subr.mxu0 0.0
        %298 = vmatpush1.msra.mxu0 0.0
        %299 = vmatprep.subr.mxu0 0.0
        %300 = vmatpush1.msra.mxu0 0.0
        %301 = vmatprep.subr.mxu0 0.0
        %302 = vmatpush1.msra.mxu0 0.0
        %303 = vmatprep.subr.mxu0 0.0
        %304 = vmatpush1.msra.mxu0 0.0
        %305 = vmatprep.subr.mxu0 0.0
        %306 = vmatpush1.msra.mxu0 0.0
        %307 = vmatprep.subr.mxu0 0.0
        %308 = vmatpush1.msra.mxu0 0.0
        %309 = vmatprep.subr.mxu0 0.0
        %310 = vmatpush1.msra.mxu0 0.0
        %311 = vmatprep.mubr.f32.mxu0 0.0
        %312 = vmatmul.mubr.f32.gmra.mrb[0].mxu0 %v245
        %v313 = vpop.f32.mrb[0].mxu0
        %v314 = vadd.f32 0.0, %v313
        %v315 = vpop.f32.mrb[0].mxu0
        %316 = vdwg.mxu0
        %v317 = vadd.f32 %v238, %v314
        %v318 = vld [vmem:[%s208] sm:$0xff]
        %v319 = vld [vmem:[%s208 + $0x8] sm:$0xff]
        %v320 = vld [vmem:[%s208 + $0x10] sm:$0xff]
        %v321 = vld [vmem:[%s208 + $0x18] sm:$0xff]
        %v322 = vld [vmem:[%s208 + $0x20] sm:$0xff]
        %v323 = vld [vmem:[%s208 + $0x28] sm:$0xff]
        %v324 = vld [vmem:[%s208 + $0x30] sm:$0xff]
        %v325 = vld [vmem:[%s208 + $0x38] sm:$0xff]
        %v326 = vld [vmem:[%s208 + $0x40] sm:$0xf]
        %v327 = vld [vmem:[%s208 + $0x48] sm:$0xf]
        %vm328 = vcmask 293888
        %v330 = vsel %vm328, %v317, 0
        %vm332 = vcmask 1043456
        %v334 = vsel %vm332, %v326, 0
        %v337 = vsel %vm332, %v327, 0
        %339 = vmatprep.subr.mxu0 %v319
        %340 = vmatpush1.msra.mxu0 %v318
        %341 = vmatprep.subr.mxu0 %v321
        %342 = vmatpush1.msra.mxu0 %v320
        %343 = vmatprep.subr.mxu0 %v323
        %344 = vmatpush1.msra.mxu0 %v322
        %345 = vmatprep.subr.mxu0 %v325
        %346 = vmatpush1.msra.mxu0 %v324
        %347 = vmatprep.subr.mxu0 %v337
        %348 = vmatpush1.msra.mxu0 %v334
        %349 = vmatprep.subr.mxu0 0.0
        %350 = vmatpush1.msra.mxu0 0.0
        %351 = vmatprep.subr.mxu0 0.0
        %352 = vmatpush1.msra.mxu0 0.0
        %353 = vmatprep.subr.mxu0 0.0
        %354 = vmatpush1.msra.mxu0 0.0
        %355 = vmatprep.subr.mxu0 0.0
        %356 = vmatpush1.msra.mxu0 0.0
        %357 = vmatprep.subr.mxu0 0.0
        %358 = vmatpush1.msra.mxu0 0.0
        %359 = vmatprep.subr.mxu0 0.0
        %360 = vmatpush1.msra.mxu0 0.0
        %361 = vmatprep.subr.mxu0 0.0
        %362 = vmatpush1.msra.mxu0 0.0
        %363 = vmatprep.subr.mxu0 0.0
        %364 = vmatpush1.msra.mxu0 0.0
        %365 = vmatprep.subr.mxu0 0.0
        %366 = vmatpush1.msra.mxu0 0.0
        %367 = vmatprep.subr.mxu0 0.0
        %368 = vmatpush1.msra.mxu0 0.0
        %369 = vmatprep.subr.mxu0 0.0
        %370 = vmatpush1.msra.mxu0 0.0
        %371 = vmatprep.subr.mxu0 0.0
        %372 = vmatpush1.msra.mxu0 0.0
        %373 = vmatprep.subr.mxu0 0.0
        %374 = vmatpush1.msra.mxu0 0.0
        %375 = vmatprep.subr.mxu0 0.0
        %376 = vmatpush1.msra.mxu0 0.0
        %377 = vmatprep.subr.mxu0 0.0
        %378 = vmatpush1.msra.mxu0 0.0
        %379 = vmatprep.subr.mxu0 0.0
        %380 = vmatpush1.msra.mxu0 0.0
        %381 = vmatprep.subr.mxu0 0.0
        %382 = vmatpush1.msra.mxu0 0.0
        %383 = vmatprep.subr.mxu0 0.0
        %384 = vmatpush1.msra.mxu0 0.0
        %385 = vmatprep.subr.mxu0 0.0
        %386 = vmatpush1.msra.mxu0 0.0
        %387 = vmatprep.subr.mxu0 0.0
        %388 = vmatpush1.msra.mxu0 0.0
        %389 = vmatprep.subr.mxu0 0.0
        %390 = vmatpush1.msra.mxu0 0.0
        %391 = vmatprep.subr.mxu0 0.0
        %392 = vmatpush1.msra.mxu0 0.0
        %393 = vmatprep.subr.mxu0 0.0
        %394 = vmatpush1.msra.mxu0 0.0
        %395 = vmatprep.subr.mxu0 0.0
        %396 = vmatpush1.msra.mxu0 0.0
        %397 = vmatprep.subr.mxu0 0.0
        %398 = vmatpush1.msra.mxu0 0.0
        %399 = vmatprep.subr.mxu0 0.0
        %400 = vmatpush1.msra.mxu0 0.0
        %401 = vmatprep.subr.mxu0 0.0
        %402 = vmatpush1.msra.mxu0 0.0
        %403 = vmatprep.mubr.f32.mxu0 0.0
        %404 = vmatmul.mubr.f32.gmra.mrb[0].mxu0 %v330
        %v405 = vpop.f32.mrb[0].mxu0
        %v406 = vadd.f32 0.0, %v405
        %v407 = vpop.f32.mrb[0].mxu0
        %v408 = vadd.f32 0.0, %v407
        %409 = vdwg.mxu0
        %410 = vst [vmem:[%s236] sm:$0xff] %v406
        %411 = vst [vmem:[%s236 + $0x8] sm:$0xff] %v408
        %s412 = smul.u32 2, %s15
        %p413 = scmp.lt.s32.totalorder %s412, 3
        %s414 = scalar_select %p413, %s412, 3
        %s415 = smul.addr %s414, 8
        %s416 = scalar_lea.vmem %s4, %s415
        // Predicated region
        $region60: #{_lambda_.1} parent=54 // pred_check
          %p417 = pneg %p122
        $region61: #{_lambda_.1} parent=54 // pred_check_branch
          %419 = sbr.rel (%p417) target = $region63
        $region62: #{_lambda_.1} parent=54 // pred_region
          %s420 = smul.u32 2, %s15
        $region63: #{_lambda_.1} parent=54 // pred_fallthru
          _
      $region55: #{_lambda_.1} parent=5 // pred_fallthru
        _
      %p421 = scmp.le.s32.totalorder 2, %s10
      // Predicated region
      $region64: #{_lambda_.1} parent=5 // pred_check
        %p422 = pneg %p421
      $region65: #{_lambda_.1} parent=5 // pred_check_branch
        %424 = sbr.rel (%p422) target = $region67
      $region66: #{_lambda_.1} parent=5 // pred_region
        %s425 = ssub.s32 %s10, 2
        // Predicated region
        $region68: #{_lambda_.1} parent=66 // pred_check
          %p426 = pneg %p128
        $region69: #{_lambda_.1} parent=66 // pred_check_branch
          %428 = sbr.rel (%p426) target = $region71
        $region70: #{_lambda_.1} parent=66 // pred_region
          %s429 = smul.u32 2, %s16
          %p430 = scmp.lt.s32.totalorder %s429, 3
          %s431 = scalar_select %p430, %s429, 3
          %s432 = smul.addr %s431, 8
          %s433 = scalar_lea.vmem %s4, %s432
        $region71: #{_lambda_.1} parent=66 // pred_fallthru
          _
      $region67: #{_lambda_.1} parent=5 // pred_fallthru
        _
    $region6: #{_lambda_.1} parent=1 // loop_footer
      %s14 = sadd.s32 1, %s10
    $region7: #{_lambda_.1} parent=1 // loop_footer_branch
      %9 = sbr.rel target = $region3
    $region8: #{_lambda_.1} parent=1 // loop_exit
      _

</llo_original>
